<compile_context>
chip_gen: v6e
topology: v6e:2x2x1
jax: 0.10.0
libtpu: 0.0.40
codegen_flags: <defaults>
</compile_context>

<pallas_src>
import functools

import jax
import jax.numpy as jnp
from jax.experimental import pallas as pl
from jax.experimental.pallas import tpu as pltpu

_LANE = 128
_SUBLANE = 8
# ~2 MiB per block => 4 x block (in+out, double-buffered) = 8 MiB: safe under
# v5e's 16 MiB default scoped VMEM and v6e/v7x's 32 MiB, big enough to
# amortize the ~0.35 us per-grid-step overhead.
_TARGET_BLOCK_BYTES = 2 * 1024 * 1024


def _swish_kernel(x_ref, o_ref):
    # Compute in f32 for parity with torch.sigmoid; elementwise VPU/EUP work
    # is fully hidden behind the HBM DMAs for this mem-bound op.
    xf = x_ref[...].astype(jnp.float32)
    o_ref[...] = (xf * jax.nn.sigmoid(xf)).astype(o_ref.dtype)


def _round_up(v, m):
    return ((v + m - 1) // m) * m


def _pick_lane(n):
    """Widest lane dim that divides n, preferring >= 8 sublane rows."""
    for lane in (1024, 512, 256, 128):
        if n % lane == 0 and n // lane >= _SUBLANE:
            return lane
    for lane in (1024, 512, 256, 128):
        if n % lane == 0:
            return lane
    return None


def _pick_tile_rows(rows, lane, itemsize):
    target = max(_SUBLANE, _TARGET_BLOCK_BYTES // (lane * itemsize))
    tile = _round_up(min(target, rows), _SUBLANE)
    if tile >= rows:
        if rows >= 4 * _SUBLANE:
            # Enough work: split into >= 2 grid steps so the parallel axis
            # can shard across the two TensorCores on v7x.
            tile = _round_up(pl.cdiv(rows, 2), _SUBLANE)
        else:
            # Single full-extent block; (8,128) divisibility rule not needed.
            tile = rows
    return tile


def _swish_impl(x, *, alias):
    orig_shape = x.shape
    n = x.size
    if n == 0:
        return x

    lane = _pick_lane(n)
    if lane is None:
        # Rare path: flat size not a multiple of 128.  Pad only up to the next
        # lane multiple (<128 extra elements); swish(0) == 0 so the tail is
        # benign and gets sliced off below.
        lane = _LANE
        n_pad = _round_up(n, lane)
        x_flat = jnp.pad(jnp.reshape(x, (-1,)), (0, n_pad - n))
    else:
        n_pad = n
        x_flat = jnp.reshape(x, (-1,))

    rows = n_pad // lane
    x2d = jnp.reshape(x_flat, (rows, lane))
    tile_rows = _pick_tile_rows(rows, lane, x.dtype.itemsize)
    grid = (pl.cdiv(rows, tile_rows),)

    out2d = pl.pallas_call(
        _swish_kernel,
        out_shape=jax.ShapeDtypeStruct((rows, lane), x.dtype),
        grid_spec=pltpu.PrefetchScalarGridSpec(
            num_scalar_prefetch=0,
            grid=grid,
            in_specs=[pl.BlockSpec((tile_rows, lane), lambda i: (i, 0))],
            out_specs=pl.BlockSpec((tile_rows, lane), lambda i: (i, 0)),
        ),
        compiler_params=pltpu.CompilerParams(
            dimension_semantics=("parallel",),
        ),
        input_output_aliases={0: 0} if alias else {},
    )(x2d)

    out_flat = jnp.reshape(out2d, (-1,))
    if n_pad != n:
        out_flat = out_flat[:n]
    return jnp.reshape(out_flat, orig_shape)


# Out-of-place (default, matches the PyTorch module) and donated (in-place,
# zero extra HBM buffer) entry points.
_swish_oop = jax.jit(functools.partial(_swish_impl, alias=False))
_swish_donated = jax.jit(functools.partial(_swish_impl, alias=True),
                         donate_argnums=(0,))


def swish(x: jax.Array, *, donate_input: bool = False) -> jax.Array:
    """Elementwise swish; set donate_input=True only if x is not reused."""
    if donate_input:
        return _swish_donated(x)
    return _swish_oop(x)


if __name__ == "__main__":
    key = jax.random.PRNGKey(0)
    # NCHW, same convention as the PyTorch module's typical conv-feature input.
    x = jax.random.normal(key, (2, 4, 16, 16), dtype=jnp.float32)

    y_ref = x * jax.nn.sigmoid(x)

    # Default out-of-place path.
    y = swish(x)
    jax.block_until_ready(y)
    assert y.shape == x.shape and y.dtype == x.dtype
    assert jnp.allclose(y, y_ref, atol=1e-6, rtol=1e-6)

    # Donated (in-place) path on a fresh buffer that is not reused afterwards.
    x2 = x + 0.0
    y2 = swish(x2, donate_input=True)
    jax.block_until_ready(y2)
    assert jnp.allclose(y2, y_ref, atol=1e-6, rtol=1e-6)

    print("KERNEL_OK")
</pallas_src>

<mosaic_0001>
module attributes {stable_mosaic.version = 11 : i64} {
  func.func @_swish_kernel(%arg0: i32, %arg1: memref<8x256xf32, #tpu.memory_space<vmem>>, %arg2: memref<8x256xf32, #tpu.memory_space<vmem>>) attributes {dimension_semantics = [#tpu.dimension_semantics<parallel>], iteration_bounds = array<i64: 1>, scalar_prefetch = 0 : i64, scratch_operands = 0 : i64, tpu.core_type = #tpu.core_type<tc>, window_params = [{transform_indices = @transform_0, window_bounds = array<i64: 8, 256>}, {transform_indices = @transform_1, window_bounds = array<i64: 8, 256>}]} {
    %c0 = arith.constant 0 : index
    %c0_0 = arith.constant 0 : index
    %0 = vector.load %arg1[%c0, %c0_0] : memref<8x256xf32, #tpu.memory_space<vmem>>, vector<8x256xf32>
    %1 = arith.negf %0 : vector<8x256xf32>
    %2 = math.exp %1 : vector<8x256xf32>
    %cst = arith.constant 1.000000e+00 : f32
    %3 = vector.broadcast %cst : f32 to vector<8x256xf32>
    %4 = arith.addf %3, %2 : vector<8x256xf32>
    %5 = arith.divf %3, %4 : vector<8x256xf32>
    %6 = arith.mulf %0, %5 : vector<8x256xf32>
    %c0_1 = arith.constant 0 : index
    %c0_2 = arith.constant 0 : index
    %7 = vector.load %arg2[%c0_1, %c0_2] : memref<8x256xf32, #tpu.memory_space<vmem>>, vector<8x256xf32>
    tpu.vector_store %arg2[%c0_1, %c0_2], %6 {strides = array<i32>} : memref<8x256xf32, #tpu.memory_space<vmem>>, vector<8x256xf32>,
    return
  }
  func.func @transform_0(%arg0: i32) -> (i32, i32) {
    %c0_i32 = arith.constant 0 : i32
    %c0_i32_0 = arith.constant 0 : i32
    return %arg0, %c0_i32 : i32, i32
  }
  func.func @transform_1(%arg0: i32) -> (i32, i32) {
    %c0_i32 = arith.constant 0 : i32
    %c0_i32_0 = arith.constant 0 : i32
    return %arg0, %c0_i32 : i32, i32
  }
}

</mosaic_0001>

<llo_original>
// kernel: _swish_impl.1
$region0: #{_swish_impl.1}
  #allocation0 [shape = 'u32[]', space=smem, size = 0x4, offset = 0x4, fixed_abs, tag = 'smem constant byte address 0x4 - core index']
  #allocation1 [shape = 'u32[144,128]{1,0:T(1,128)}', space=vmem, size = 0x12000, scoped, tag = 'internal scratch']
  %s0 = inlined_call_operand.vmem [shape: f32[8,256], index: 0, kind: input, shape index: {}]
  %s1 = inlined_call_operand.vmem [shape: f32[8,256], index: 1, kind: output, shape index: {}]
  %s2 = sld [smem:[#allocation0]]
  $region14: #{_swish_impl.1} parent=0
    _
  %s4 = ssub.s32 1, %s2
  %s5 = scalar_select 0, %s4, %s2
  // Predicated region
  $region2: #{_swish_impl.1} parent=0 // pred_check
    _
  $region3: #{_swish_impl.1} parent=0 // pred_check_branch
    %7 = sbr.rel (0) target = $region5
  $region4: #{_swish_impl.1} parent=0 // pred_region
    _
  $region5: #{_swish_impl.1} parent=0 // pred_fallthru
    _
  %v8 = vld [vmem:[%s0] sm:$0xff]
  %v9 = vld [vmem:[%s0 + $0x8] sm:$0xff]
  %v10 = vxor.u32 %v8, 2147483648
  %v11 = vxor.u32 %v9, 2147483648
  %v12 = vmul.f32 %v10, 1.442695
  %v13 = vpow.pop %v12
  %v14 = vmul.f32 %v11, 1.442695
  %v15 = vpow.pop %v14
  %v16 = vadd.f32 %v13, 1.0
  %v17 = vadd.f32 %v15, 1.0
  %v18 = vrcp.pop %v16
  %v19 = vmul.f32 1.0, %v18
  %v20 = vrcp.pop %v17
  %v21 = vmul.f32 1.0, %v20
  %v22 = vmul.f32 %v8, %v19
  %v23 = vmul.f32 %v9, %v21
  %24 = vst [vmem:[%s1] sm:$0xff] %v22
  %25 = vst [vmem:[%s1 + $0x8] sm:$0xff] %v23
  // Predicated region
  $region6: #{_swish_impl.1} parent=0 // pred_check
    _
  $region7: #{_swish_impl.1} parent=0 // pred_check_branch
    %27 = sbr.rel (0) target = $region9
  $region8: #{_swish_impl.1} parent=0 // pred_region
    _
  $region9: #{_swish_impl.1} parent=0 // pred_fallthru
    _
  // Predicated region
  $region10: #{_swish_impl.1} parent=0 // pred_check
    _
  $region11: #{_swish_impl.1} parent=0 // pred_check_branch
    %29 = sbr.rel (0) target = $region13
  $region12: #{_swish_impl.1} parent=0 // pred_region
    _
  $region13: #{_swish_impl.1} parent=0 // pred_fallthru
    _

</llo_original>
